<compile_context>
chip_gen: v7x
topology: tpu7x:2x2x1
jax: 0.10.0
libtpu: 0.0.40
codegen_flags: <defaults>
</compile_context>

<pallas_src>
import jax
import jax.numpy as jnp
from jax.experimental import pallas as pl
from jax.experimental.pallas import tpu as pltpu

EPS = 1e-5


def project_noise_kernel(x_ref, w_ref, b_ref, g_ref, beta_ref, out_ref):
    B = x_ref.shape[0]

    # Linear: one MXU matmul per feature tile, f32 accumulation.
    y = jnp.dot(x_ref[...], w_ref[...],
                preferred_element_type=jnp.float32) + b_ref[...]

    # BatchNorm1d (training mode): biased batch stats over the batch axis,
    # computed in a single pass (var = E[y^2] - mean^2).
    inv_b = 1.0 / B
    mean = jnp.sum(y, axis=0, keepdims=True) * inv_b
    ex2 = jnp.sum(y * y, axis=0, keepdims=True) * inv_b
    var = ex2 - mean * mean
    y = (y - mean) * jax.lax.rsqrt(var + EPS) * g_ref[...] + beta_ref[...]

    # ReLU + lane-dense store.
    out_ref[...] = jnp.maximum(y, 0.0).astype(out_ref.dtype)


def project_noise_forward(x, w_pt, b, gamma, beta):
    """x: (B, Din) f32.  w_pt: PyTorch Linear weight (Dout, Din).  b/gamma/beta: (Dout,)."""
    B, Din = x.shape
    Dout = w_pt.shape[0]

    # Repack: weight -> (Din, Dout) so features sit on the lane axis; per-feature
    # vectors -> (1, Dout) rows.
    w = jnp.transpose(w_pt, (1, 0))
    b2 = b.reshape(1, Dout)
    g2 = gamma.reshape(1, Dout)
    be2 = beta.reshape(1, Dout)

    # Feature tile: 128 lanes when possible, else the full (small) feature dim.
    TN = 128 if Dout % 128 == 0 else Dout
    grid = (Dout // TN,)

    flops = 2 * B * Din * Dout
    bytes_accessed = 4 * (B * Din + Din * Dout + 3 * Dout + B * Dout)

    out = pl.pallas_call(
        project_noise_kernel,
        out_shape=jax.ShapeDtypeStruct((B, Dout), jnp.float32),
        grid_spec=pltpu.PrefetchScalarGridSpec(
            num_scalar_prefetch=0,
            grid=grid,
            in_specs=[
                pl.BlockSpec((B, Din), lambda j: (0, 0)),    # x reused by every tile
                pl.BlockSpec((Din, TN), lambda j: (0, j)),   # weight tile
                pl.BlockSpec((1, TN), lambda j: (0, j)),     # linear bias tile
                pl.BlockSpec((1, TN), lambda j: (0, j)),     # BN gamma tile
                pl.BlockSpec((1, TN), lambda j: (0, j)),     # BN beta tile
            ],
            out_specs=pl.BlockSpec((B, TN), lambda j: (0, j)),
        ),
        compiler_params=pltpu.CompilerParams(
            dimension_semantics=("parallel",),
            vmem_limit_bytes=64 << 20,
        ),
        cost_estimate=pl.CostEstimate(flops=flops, transcendentals=Dout,
                                      bytes_accessed=bytes_accessed),
    )(x, w, b2, g2, be2)
    return out


if __name__ == "__main__":
    # Small shapes consistent with the module: project a noise vector
    # (batch=8, in_features=32) to a lane-dense hidden size (out_features=128).
    B, Din, Dout = 8, 32, 128

    key = jax.random.PRNGKey(0)
    ks = jax.random.split(key, 5)
    w_pt = 0.2 * jax.random.normal(ks[0], (Dout, Din), jnp.float32)   # nn.Linear weight
    b = 0.1 * jax.random.normal(ks[1], (Dout,), jnp.float32)          # nn.Linear bias
    gamma = 1.0 + 0.1 * jax.random.normal(ks[2], (Dout,), jnp.float32)  # BN weight
    beta = 0.1 * jax.random.normal(ks[3], (Dout,), jnp.float32)         # BN bias
    x = jax.random.normal(ks[4], (B, Din), jnp.float32)

    out = jax.block_until_ready(project_noise_forward(x, w_pt, b, gamma, beta))
    assert out.shape == (B, Dout)

    # Plain-JAX reference with PyTorch training-mode semantics.
    y_ref = x @ w_pt.T + b
    mean = jnp.mean(y_ref, axis=0, keepdims=True)
    var = jnp.mean((y_ref - mean) ** 2, axis=0, keepdims=True)        # biased
    y_ref = (y_ref - mean) * jax.lax.rsqrt(var + EPS) * gamma + beta
    ref = jnp.maximum(y_ref, 0.0)

    if not jnp.allclose(out, ref, rtol=1e-3, atol=1e-3):
        raise AssertionError(
            f"mismatch: max abs diff = {float(jnp.max(jnp.abs(out - ref)))}")
    print("KERNEL_OK")
</pallas_src>

<mosaic_0001>
module attributes {stable_mosaic.version = 11 : i64} {
  func.func @project_noise_kernel(%arg0: i32, %arg1: memref<8x32xf32, #tpu.memory_space<vmem>>, %arg2: memref<32x128xf32, #tpu.memory_space<vmem>>, %arg3: memref<1x128xf32, #tpu.memory_space<vmem>>, %arg4: memref<1x128xf32, #tpu.memory_space<vmem>>, %arg5: memref<1x128xf32, #tpu.memory_space<vmem>>, %arg6: memref<8x128xf32, #tpu.memory_space<vmem>>) attributes {dimension_semantics = [#tpu.dimension_semantics<parallel>], iteration_bounds = array<i64: 1>, scalar_prefetch = 0 : i64, scratch_operands = 0 : i64, tpu.core_type = #tpu.core_type<tc>, window_params = [{pipeline_mode = #tpu.pipeline_mode<synchronous>, transform_indices = @transform_0, window_bounds = array<i64: 8, 32>}, {transform_indices = @transform_1, window_bounds = array<i64: 32, 128>}, {transform_indices = @transform_2, window_bounds = array<i64: 1, 128>}, {transform_indices = @transform_3, window_bounds = array<i64: 1, 128>}, {transform_indices = @transform_4, window_bounds = array<i64: 1, 128>}, {transform_indices = @transform_5, window_bounds = array<i64: 8, 128>}]} {
    %c0 = arith.constant 0 : index
    %c0_0 = arith.constant 0 : index
    %0 = vector.load %arg1[%c0, %c0_0] : memref<8x32xf32, #tpu.memory_space<vmem>>, vector<8x32xf32>
    %c0_1 = arith.constant 0 : index
    %c0_2 = arith.constant 0 : index
    %1 = vector.load %arg2[%c0_1, %c0_2] : memref<32x128xf32, #tpu.memory_space<vmem>>, vector<32x128xf32>
    %cst = arith.constant dense<0.000000e+00> : vector<8x128xf32>
    %2 = tpu.matmul %0, %1, %cst {dimension_numbers = #tpu.dot_dimension_numbers<[1], [0], [0], [1], [0, 0, 1, 1], [], []>} : vector<8x32xf32>, vector<32x128xf32>, vector<8x128xf32> -> vector<8x128xf32>
    %c0_3 = arith.constant 0 : index
    %c0_4 = arith.constant 0 : index
    %3 = vector.load %arg3[%c0_3, %c0_4] : memref<1x128xf32, #tpu.memory_space<vmem>>, vector<1x128xf32>
    %4 = vector.broadcast %3 : vector<1x128xf32> to vector<8x128xf32>
    %5 = arith.addf %2, %4 : vector<8x128xf32>
    %cst_5 = arith.constant dense<0.000000e+00> : vector<128xf32>
    %6 = vector.multi_reduction <add>, %5, %cst_5 [0] : vector<8x128xf32> to vector<128xf32>
    %7 = vector.shape_cast %6 : vector<128xf32> to vector<1x128xf32>
    %cst_6 = arith.constant 1.250000e-01 : f32
    %8 = vector.broadcast %cst_6 : f32 to vector<1x128xf32>
    %9 = arith.mulf %7, %8 : vector<1x128xf32>
    %10 = arith.mulf %5, %5 : vector<8x128xf32>
    %cst_7 = arith.constant dense<0.000000e+00> : vector<128xf32>
    %11 = vector.multi_reduction <add>, %10, %cst_7 [0] : vector<8x128xf32> to vector<128xf32>
    %12 = vector.shape_cast %11 : vector<128xf32> to vector<1x128xf32>
    %cst_8 = arith.constant 1.250000e-01 : f32
    %13 = vector.broadcast %cst_8 : f32 to vector<1x128xf32>
    %14 = arith.mulf %12, %13 : vector<1x128xf32>
    %15 = arith.mulf %9, %9 : vector<1x128xf32>
    %16 = arith.subf %14, %15 : vector<1x128xf32>
    %17 = vector.broadcast %9 : vector<1x128xf32> to vector<8x128xf32>
    %18 = arith.subf %5, %17 : vector<8x128xf32>
    %cst_9 = arith.constant 9.99999974E-6 : f32
    %19 = vector.broadcast %cst_9 : f32 to vector<1x128xf32>
    %20 = arith.addf %16, %19 : vector<1x128xf32>
    %21 = math.rsqrt %20 : vector<1x128xf32>
    %22 = vector.broadcast %21 : vector<1x128xf32> to vector<8x128xf32>
    %23 = arith.mulf %18, %22 : vector<8x128xf32>
    %c0_10 = arith.constant 0 : index
    %c0_11 = arith.constant 0 : index
    %24 = vector.load %arg4[%c0_10, %c0_11] : memref<1x128xf32, #tpu.memory_space<vmem>>, vector<1x128xf32>
    %25 = vector.broadcast %24 : vector<1x128xf32> to vector<8x128xf32>
    %26 = arith.mulf %23, %25 : vector<8x128xf32>
    %c0_12 = arith.constant 0 : index
    %c0_13 = arith.constant 0 : index
    %27 = vector.load %arg5[%c0_12, %c0_13] : memref<1x128xf32, #tpu.memory_space<vmem>>, vector<1x128xf32>
    %28 = vector.broadcast %27 : vector<1x128xf32> to vector<8x128xf32>
    %29 = arith.addf %26, %28 : vector<8x128xf32>
    %cst_14 = arith.constant 0.000000e+00 : f32
    %30 = vector.broadcast %cst_14 : f32 to vector<8x128xf32>
    %31 = arith.maximumf %29, %30 : vector<8x128xf32>
    %c0_15 = arith.constant 0 : index
    %c0_16 = arith.constant 0 : index
    %32 = vector.load %arg6[%c0_15, %c0_16] : memref<8x128xf32, #tpu.memory_space<vmem>>, vector<8x128xf32>
    tpu.vector_store %arg6[%c0_15, %c0_16], %31 {strides = array<i32>} : memref<8x128xf32, #tpu.memory_space<vmem>>, vector<8x128xf32>,
    return
  }
  func.func @transform_0(%arg0: i32) -> (i32, i32) {
    %c0_i32 = arith.constant 0 : i32
    %c0_i32_0 = arith.constant 0 : i32
    %c0_i32_1 = arith.constant 0 : i32
    return %c0_i32, %c0_i32_0 : i32, i32
  }
  func.func @transform_1(%arg0: i32) -> (i32, i32) {
    %c0_i32 = arith.constant 0 : i32
    %c0_i32_0 = arith.constant 0 : i32
    return %c0_i32, %arg0 : i32, i32
  }
  func.func @transform_2(%arg0: i32) -> (i32, i32) {
    %c0_i32 = arith.constant 0 : i32
    %c0_i32_0 = arith.constant 0 : i32
    return %c0_i32, %arg0 : i32, i32
  }
  func.func @transform_3(%arg0: i32) -> (i32, i32) {
    %c0_i32 = arith.constant 0 : i32
    %c0_i32_0 = arith.constant 0 : i32
    return %c0_i32, %arg0 : i32, i32
  }
  func.func @transform_4(%arg0: i32) -> (i32, i32) {
    %c0_i32 = arith.constant 0 : i32
    %c0_i32_0 = arith.constant 0 : i32
    return %c0_i32, %arg0 : i32, i32
  }
  func.func @transform_5(%arg0: i32) -> (i32, i32) {
    %c0_i32 = arith.constant 0 : i32
    %c0_i32_0 = arith.constant 0 : i32
    return %c0_i32, %arg0 : i32, i32
  }
}

</mosaic_0001>

<llo_original>
// kernel: tpu_custom_call.1
$region0: #{tpu_custom_call.1}
  #allocation0 [shape = 'u32[]', space=smem, size = 0x4, offset = 0x4, fixed_abs, tag = 'smem constant byte address 0x4 - core index']
  #allocation1 [shape = 'u32[144,128]{1,0:T(1,128)}', space=vmem, size = 0x12000, scoped, tag = 'internal scratch']
  %s0 = inlined_call_operand.hbm [shape: f32[8,32], index: 0, kind: input, shape index: {}]
  %s1 = inlined_call_operand.hbm [shape: f32[32,128], index: 1, kind: input, shape index: {}]
  %s2 = inlined_call_operand.hbm [shape: f32[1,128], index: 2, kind: input, shape index: {}]
  %s3 = inlined_call_operand.hbm [shape: f32[1,128], index: 3, kind: input, shape index: {}]
  %s4 = inlined_call_operand.hbm [shape: f32[1,128], index: 4, kind: input, shape index: {}]
  %s5 = inlined_call_operand.hbm [shape: f32[8,128], index: 5, kind: output, shape index: {}]
  %s6 = sld [smem:[#allocation0]]
  $region50: #{tpu_custom_call.1} parent=0
    _
  %s8 = ssub.s32 1, %s6
  %s9 = scalar_select 0, %s8, %s6
  $region1: #{tpu_custom_call.1} parent=0
    #allocation2 [shape = 'u8[4096]{0}', space=vmem, size = 0x1000, scoped, tag = 'input window, operand 0, single buffered']
    #allocation3 [shape = 's32[1]{0}', space=sflag, size = 0x4, scoped, tag = 'scoped memory for tpu_custom_call.1']
    #allocation4 [shape = 's32[1]{0}', space=sflag, size = 0x4, scoped, tag = 'scoped memory for tpu_custom_call.1']
    #allocation5 [shape = 'u8[16384]{0}', space=vmem, size = 0x4000, scoped, tag = 'input window, operand 1, single buffered']
    #allocation6 [shape = 's32[1]{0}', space=sflag, size = 0x4, scoped, tag = 'scoped memory for tpu_custom_call.1']
    #allocation7 [shape = 'u8[512]{0}', space=vmem, size = 0x400, scoped, tag = 'input window, operand 2, single buffered']
    #allocation8 [shape = 'u8[512]{0}', space=vmem, size = 0x400, scoped, tag = 'input window, operand 3, single buffered']
    #allocation9 [shape = 's32[1]{0}', space=sflag, size = 0x4, scoped, tag = 'scoped memory for tpu_custom_call.1']
    #allocation10 [shape = 'u8[512]{0}', space=vmem, size = 0x400, scoped, tag = 'input window, operand 4, single buffered']
    #allocation11 [shape = 'u8[4096]{0}', space=vmem, size = 0x1000, scoped, tag = 'output window, operand 0, single buffered']
    %10 = vsyncpa [#allocation3], 0
    %11 = vsyncpa [#allocation6], 0
    %12 = vsyncpa [#allocation9], 0
    %13 = vsyncpa [#allocation4], 0
    // Predicated region
    $region2: #{tpu_custom_call.1} parent=1 // pred_check
      _
    $region3: #{tpu_custom_call.1} parent=1 // pred_check_branch
      %15 = sbr.rel (0) target = $region5
    $region4: #{tpu_custom_call.1} parent=1 // pred_region
      %s17 = ssub.s32 128, 128
      %18 = vsyncadd [#allocation3], %s17
      %s20 = sshll.u32 [#allocation2], 4
      %s21 = int_to_ptr.vmem [resolvable:$true] %s20
      %23 = dma.hbm_to_vmem [thread:$0]  %s0, 128, %s21, [#allocation3]
    $region5: #{tpu_custom_call.1} parent=1 // pred_fallthru
      _
    // Predicated region
    $region6: #{tpu_custom_call.1} parent=1 // pred_check
      _
    $region7: #{tpu_custom_call.1} parent=1 // pred_check_branch
      %25 = sbr.rel (0) target = $region9
    $region8: #{tpu_custom_call.1} parent=1 // pred_region
      %s27 = ssub.s32 512, 512
      %28 = vsyncadd [#allocation6], %s27
      %s29 = sshll.u32 [#allocation5], 4
      %s30 = int_to_ptr.vmem [resolvable:$true] %s29
      %35 = dma.hbm_to_vmem [thread:$0]  %s1, 512, %s30, [#allocation6], 128, 128, 8
    $region9: #{tpu_custom_call.1} parent=1 // pred_fallthru
      _
    // Predicated region
    $region10: #{tpu_custom_call.1} parent=1 // pred_check
      _
    $region11: #{tpu_custom_call.1} parent=1 // pred_check_branch
      %37 = sbr.rel (0) target = $region13
    $region12: #{tpu_custom_call.1} parent=1 // pred_region
      %s39 = ssub.s32 16, 16
      %40 = vsyncadd [#allocation6], %s39
      %s42 = sshll.u32 [#allocation7], 4
      %s43 = int_to_ptr.vmem [resolvable:$true] %s42
      %45 = dma.hbm_to_vmem [thread:$0]  %s2, 16, %s43, [#allocation6]
    $region13: #{tpu_custom_call.1} parent=1 // pred_fallthru
      _
    // Predicated region
    $region14: #{tpu_custom_call.1} parent=1 // pred_check
      _
    $region15: #{tpu_custom_call.1} parent=1 // pred_check_branch
      %47 = sbr.rel (0) target = $region17
    $region16: #{tpu_custom_call.1} parent=1 // pred_region
      %s49 = ssub.s32 16, 16
      %50 = vsyncadd [#allocation9], %s49
      %s52 = sshll.u32 [#allocation8], 4
      %s53 = int_to_ptr.vmem [resolvable:$true] %s52
      %55 = dma.hbm_to_vmem [thread:$0]  %s3, 16, %s53, [#allocation9]
    $region17: #{tpu_custom_call.1} parent=1 // pred_fallthru
      _
    // Predicated region
    $region18: #{tpu_custom_call.1} parent=1 // pred_check
      _
    $region19: #{tpu_custom_call.1} parent=1 // pred_check_branch
      %57 = sbr.rel (0) target = $region21
    $region20: #{tpu_custom_call.1} parent=1 // pred_region
      %s59 = ssub.s32 16, 16
      %60 = vsyncadd [#allocation9], %s59
      %s62 = sshll.u32 [#allocation10], 4
      %s63 = int_to_ptr.vmem [resolvable:$true] %s62
      %65 = dma.hbm_to_vmem [thread:$0]  %s4, 16, %s63, [#allocation9]
    $region21: #{tpu_custom_call.1} parent=1 // pred_fallthru
      _
    // Predicated region
    $region22: #{tpu_custom_call.1} parent=1 // pred_check
      _
    $region23: #{tpu_custom_call.1} parent=1 // pred_check_branch
      %67 = sbr.rel (0) target = $region25
    $region24: #{tpu_custom_call.1} parent=1 // pred_region
      %68 = dma.done [#allocation3], 128
    $region25: #{tpu_custom_call.1} parent=1 // pred_fallthru
      _
    // Predicated region
    $region26: #{tpu_custom_call.1} parent=1 // pred_check
      _
    $region27: #{tpu_custom_call.1} parent=1 // pred_check_branch
      %70 = sbr.rel (0) target = $region29
    $region28: #{tpu_custom_call.1} parent=1 // pred_region
      %71 = dma.done [#allocation6], 512
    $region29: #{tpu_custom_call.1} parent=1 // pred_fallthru
      _
    // Predicated region
    $region30: #{tpu_custom_call.1} parent=1 // pred_check
      _
    $region31: #{tpu_custom_call.1} parent=1 // pred_check_branch
      %73 = sbr.rel (0) target = $region33
    $region32: #{tpu_custom_call.1} parent=1 // pred_region
      %74 = dma.done [#allocation6], 16
    $region33: #{tpu_custom_call.1} parent=1 // pred_fallthru
      _
    // Predicated region
    $region34: #{tpu_custom_call.1} parent=1 // pred_check
      _
    $region35: #{tpu_custom_call.1} parent=1 // pred_check_branch
      %76 = sbr.rel (0) target = $region37
    $region36: #{tpu_custom_call.1} parent=1 // pred_region
      %77 = dma.done [#allocation9], 16
    $region37: #{tpu_custom_call.1} parent=1 // pred_fallthru
      _
    // Predicated region
    $region38: #{tpu_custom_call.1} parent=1 // pred_check
      _
    $region39: #{tpu_custom_call.1} parent=1 // pred_check_branch
      %79 = sbr.rel (0) target = $region41
    $region40: #{tpu_custom_call.1} parent=1 // pred_region
      %80 = dma.done [#allocation9], 16
    $region41: #{tpu_custom_call.1} parent=1 // pred_fallthru
      _
    %v81 = vld [vmem:[#allocation2] sm:$0xff]
    %v82 = vld [vmem:[#allocation5] sm:$0xff]
    %v83 = vld [vmem:[#allocation5 + $0x8] sm:$0xff]
    %v84 = vld [vmem:[#allocation5 + $0x10] sm:$0xff]
    %v85 = vld [vmem:[#allocation5 + $0x18] sm:$0xff]
    %v86 = vld [vmem:[#allocation7] sm:$0x1]
    %v88 = vlaneseq
    %v89 = vshrl.u32 %v88, 7
    %v90 = vsub.s32 0, %v89
    %v91 = vrot.slane %v86, %v90
    %vm93 = vcmask 261120
    %v95 = vsel %vm93, %v81, 0
    %97 = vmatprep.subr.mxu0 0.0
    %98 = vmatpush1.msra.mxu0 %v82
    %99 = vmatprep.subr.mxu0 0.0
    %100 = vmatpush1.msra.mxu0 %v83
    %101 = vmatprep.subr.mxu0 0.0
    %102 = vmatpush1.msra.mxu0 %v84
    %103 = vmatprep.subr.mxu0 0.0
    %104 = vmatpush1.msra.mxu0 %v85
    %105 = vmatprep.subr.mxu0 0.0
    %106 = vmatpush1.msra.mxu0 0.0
    %107 = vmatprep.subr.mxu0 0.0
    %108 = vmatpush1.msra.mxu0 0.0
    %109 = vmatprep.subr.mxu0 0.0
    %110 = vmatpush1.msra.mxu0 0.0
    %111 = vmatprep.subr.mxu0 0.0
    %112 = vmatpush1.msra.mxu0 0.0
    %113 = vmatprep.subr.mxu0 0.0
    %114 = vmatpush1.msra.mxu0 0.0
    %115 = vmatprep.subr.mxu0 0.0
    %116 = vmatpush1.msra.mxu0 0.0
    %117 = vmatprep.subr.mxu0 0.0
    %118 = vmatpush1.msra.mxu0 0.0
    %119 = vmatprep.subr.mxu0 0.0
    %120 = vmatpush1.msra.mxu0 0.0
    %121 = vmatprep.subr.mxu0 0.0
    %122 = vmatpush1.msra.mxu0 0.0
    %123 = vmatprep.subr.mxu0 0.0
    %124 = vmatpush1.msra.mxu0 0.0
    %125 = vmatprep.subr.mxu0 0.0
    %126 = vmatpush1.msra.mxu0 0.0
    %127 = vmatprep.subr.mxu0 0.0
    %128 = vmatpush1.msra.mxu0 0.0
    %129 = vmatprep.subr.mxu0 0.0
    %130 = vmatpush1.msra.mxu0 0.0
    %131 = vmatprep.subr.mxu0 0.0
    %132 = vmatpush1.msra.mxu0 0.0
    %133 = vmatprep.subr.mxu0 0.0
    %134 = vmatpush1.msra.mxu0 0.0
    %135 = vmatprep.subr.mxu0 0.0
    %136 = vmatpush1.msra.mxu0 0.0
    %137 = vmatprep.subr.mxu0 0.0
    %138 = vmatpush1.msra.mxu0 0.0
    %139 = vmatprep.subr.mxu0 0.0
    %140 = vmatpush1.msra.mxu0 0.0
    %141 = vmatprep.subr.mxu0 0.0
    %142 = vmatpush1.msra.mxu0 0.0
    %143 = vmatprep.subr.mxu0 0.0
    %144 = vmatpush1.msra.mxu0 0.0
    %145 = vmatprep.subr.mxu0 0.0
    %146 = vmatpush1.msra.mxu0 0.0
    %147 = vmatprep.subr.mxu0 0.0
    %148 = vmatpush1.msra.mxu0 0.0
    %149 = vmatprep.subr.mxu0 0.0
    %150 = vmatpush1.msra.mxu0 0.0
    %151 = vmatprep.subr.mxu0 0.0
    %152 = vmatpush1.msra.mxu0 0.0
    %153 = vmatprep.subr.mxu0 0.0
    %154 = vmatpush1.msra.mxu0 0.0
    %155 = vmatprep.subr.mxu0 0.0
    %156 = vmatpush1.msra.mxu0 0.0
    %157 = vmatprep.subr.mxu0 0.0
    %158 = vmatpush1.msra.mxu0 0.0
    %159 = vmatprep.subr.mxu0 0.0
    %160 = vmatpush1.msra.mxu0 0.0
    %161 = vmatprep.mubr.f32.mxu0 0.0
    %162 = vmatmul.mubr.f32.gmra.mrb[0].mxu0 %v95
    %v163 = vpop.f32.mrb[0].mxu0
    %v164 = vadd.f32 %v91, %v163
    %v165 = vpop.f32.mrb[0].mxu0
    %166 = vdwg.mxu0
    %v167 = vrot.slane %v164, 4
    %v168 = vadd.f32 %v164, %v167
    %v169 = vrot.slane %v168, 2
    %v170 = vadd.f32 %v168, %v169
    %v171 = vrot.slane %v170, 1
    %v172 = vadd.f32 %v170, %v171
    %v173 = vmul.f32 %v172, 0.125
    %v174 = vmul.f32 %v164, %v164
    %v175 = vrot.slane %v174, 4
    %v176 = vadd.f32 %v174, %v175
    %v177 = vrot.slane %v176, 2
    %v178 = vadd.f32 %v176, %v177
    %v179 = vrot.slane %v178, 1
    %v180 = vadd.f32 %v178, %v179
    %v181 = vmul.f32 %v180, 0.125
    %v182 = vmul.f32 %v173, %v173
    %v183 = vsub.f32 %v181, %v182
    %v184 = vsub.f32 %v164, %v173
    %v185 = vadd.f32 %v183, 1e-05
    %v186 = vrsqrt.pop %v185
    %v187 = vmul.f32 %v184, %v186
    %v188 = vld [vmem:[#allocation8] sm:$0x1]
    %v190 = vlaneseq
    %v191 = vshrl.u32 %v190, 7
    %v192 = vsub.s32 0, %v191
    %v193 = vrot.slane %v188, %v192
    %v195 = vmul.f32 %v187, %v193
    %v196 = vld [vmem:[#allocation10] sm:$0x1]
    %v198 = vlaneseq
    %v199 = vshrl.u32 %v198, 7
    %v200 = vsub.s32 0, %v199
    %v201 = vrot.slane %v196, %v200
    %v203 = vadd.f32 %v195, %v201
    %v204 = vmax.f32 %v203, 0.0
    %205 = vst [vmem:[#allocation11] sm:$0xff] %v204
    // Predicated region
    $region42: #{tpu_custom_call.1} parent=1 // pred_check
      _
    $region43: #{tpu_custom_call.1} parent=1 // pred_check_branch
      %207 = sbr.rel (0) target = $region45
    $region44: #{tpu_custom_call.1} parent=1 // pred_region
      %s209 = ssub.s32 128, 128
      %210 = vsyncadd [#allocation4], %s209
      %s212 = sshll.u32 [#allocation11], 4
      %s213 = int_to_ptr.vmem [resolvable:$true] %s212
      %215 = dma.vmem_to_hbm [thread:$0]  %s213, 128, %s5, [#allocation4]
    $region45: #{tpu_custom_call.1} parent=1 // pred_fallthru
      _
    // Predicated region
    $region46: #{tpu_custom_call.1} parent=1 // pred_check
      _
    $region47: #{tpu_custom_call.1} parent=1 // pred_check_branch
      %217 = sbr.rel (0) target = $region49
    $region48: #{tpu_custom_call.1} parent=1 // pred_region
      %218 = dma.done [#allocation4], 128
    $region49: #{tpu_custom_call.1} parent=1 // pred_fallthru
      _
    %219 = vsyncpa [#allocation3], 1
    %220 = vsyncpa [#allocation6], 1
    %221 = vsyncpa [#allocation9], 1
    %222 = vsyncpa [#allocation4], 1

</llo_original>
